<compile_context>
chip_gen: v5e
topology: v5e:2x2
jax: 0.10.0
libtpu: 0.0.40
codegen_flags: <defaults>
</compile_context>

<pallas_src>
import functools
import math

import jax
import jax.numpy as jnp
from jax.experimental import pallas as pl
from jax.experimental.pallas import tpu as pltpu

BN_EPS = 1e-5
LANE = 128
# Rough f32 arithmetic intensity (flops/byte of x+out traffic) above which the
# fused conv is MXU-bound rather than HBM-bound; flips the two-pass strategy.
_COMPUTE_BOUND_FLOPS_PER_BYTE = 150.0


def _round_up(x, m):
    return (x + m - 1) // m * m


def _sublane_align(c):
    # Smallest t such that t*c is a multiple of 8 (f32 sublane tiling).
    return 8 // math.gcd(c, 8)


def _batch_loop(tb, body):
    """Unrolled loop over the batch elements of one tile."""
    if tb <= 8:
        for b in range(tb):            # full static unroll for small tiles
            body(b)
    else:
        def wrapped(b, carry):
            body(b)
            return carry
        jax.lax.fori_loop(0, tb, wrapped, 0, unroll=4)


def _conv_rows(x_ref, w, b, c_in, k_max, l_out):
    """Fused multi-scale conv for one batch element of the tile.

    Stacks the k_max lane-shifted windows of the 'same'-padded input along
    sublanes so the whole tap dimension folds into a single MXU contraction
    (M=c_out, K=k_max*c_in, N=l_out lane-dense).
    """
    xb = x_ref[pl.ds(b * c_in, c_in), :]                       # (c_in, l_in)
    xst = jnp.concatenate([xb[:, k:k + l_out] for k in range(k_max)], axis=0)
    return jnp.dot(w, xst, preferred_element_type=jnp.float32)  # (c_out, l_out)


def _make_stats_kernel(c_in, c_out, k_max, l_real, l_out, tb, store_y):
    def kernel(x_ref, w_ref, *refs):
        if store_y:
            y_ref, sum_ref, sq_ref, s_acc, q_acc = refs
        else:
            sum_ref, sq_ref, s_acc, q_acc = refs
            y_ref = None
        w = w_ref[...]                        # loaded once per tile
        s_acc[...] = jnp.zeros_like(s_acc)
        q_acc[...] = jnp.zeros_like(q_acc)

        def body(b):
            y = _conv_rows(x_ref, w, b, c_in, k_max, l_out)
            s_acc[...] += y
            q_acc[...] += y * y
            if store_y:
                y_ref[pl.ds(b * c_out, c_out), :] = y

        _batch_loop(tb, body)

        s = s_acc[...]
        q = q_acc[...]
        if l_real < l_out:
            # Columns past the true length hold boundary-window junk; mask them
            # out of the statistics (true element count is divided out later).
            col = jax.lax.broadcasted_iota(jnp.int32, (c_out, l_out), 1)
            valid = col < l_real
            s = jnp.where(valid, s, 0.0)
            q = jnp.where(valid, q, 0.0)
        sum_ref[0] = jnp.sum(s, axis=1, keepdims=True)
        sq_ref[0] = jnp.sum(q, axis=1, keepdims=True)

    return kernel


def _make_conv_bn_relu_kernel(c_in, c_out, k_max, l_out, tb):
    def kernel(x_ref, w_ref, scale_ref, shift_ref, o_ref):
        w = w_ref[...]
        # Hoist the per-channel affine broadcast out of the batch loop
        # (JAX does not CSE broadcast_in_dim).
        scale = jnp.broadcast_to(scale_ref[...], (c_out, l_out))
        shift = jnp.broadcast_to(shift_ref[...], (c_out, l_out))

        def body(b):
            y = _conv_rows(x_ref, w, b, c_in, k_max, l_out)
            o_ref[pl.ds(b * c_out, c_out), :] = jnp.maximum(
                y * scale + shift, 0.0).astype(o_ref.dtype)

        _batch_loop(tb, body)

    return kernel


def _bn_relu_kernel(y_ref, scale_ref, shift_ref, o_ref):
    # Elementwise folded-BN + ReLU pass for the store-pre-BN (MXU-bound) mode.
    o_ref[...] = jnp.maximum(
        y_ref[...] * scale_ref[...] + shift_ref[...], 0.0).astype(o_ref.dtype)


def _fuse_params(conv_weights, merger_weight, window_sizes, c_in, c_out):
    """Collapse the multi-scale conv bank + skip concat + 1x1 merger into one
    (k_max, c_out, c_in) 'same'-padded conv weight.  All biases are per-channel
    constants that cancel under train-mode BatchNorm, so they are dropped."""
    k_max = max(window_sizes)
    left = (k_max - 1) // 2
    m = merger_weight[:, :, 0]  # (c_out, S*c_out + c_in)
    w_eff = jnp.zeros((k_max, c_out, c_in), jnp.float32)
    for s, (w_s, ws) in enumerate(zip(conv_weights, window_sizes)):
        left_s = (ws - 1) // 2
        m_s = m[:, s * c_out:(s + 1) * c_out]          # (c_out, c_out)
        contrib = jnp.einsum("oc,cik->koi", m_s, w_s)  # (ws, c_out, c_in)
        off = left - left_s
        w_eff = w_eff.at[off:off + ws].add(contrib)
    m_skip = m[:, len(window_sizes) * c_out:]          # (c_out, c_in) skip path
    w_eff = w_eff.at[left].add(m_skip)
    return w_eff


@functools.partial(jax.jit, static_argnames=("window_sizes", "force_mode"))
def multiscale_conv_block_forward(x, conv_weights, conv_biases, merger_weight,
                                  merger_bias, gamma, beta, *,
                                  window_sizes, force_mode=None):
    # Biases cancel exactly under train-mode BN (mean subtraction).  NOTE: this
    # fusion is only valid for training-mode BN; eval-mode running statistics
    # (which do see the biases) are not modelled here.
    del conv_biases, merger_bias
    n, c_in, l_real = x.shape
    c_out = merger_weight.shape[0]
    k_max = max(window_sizes)
    left = (k_max - 1) // 2

    # Lane-dense compute width (multiple of 128) and 'same'-padded input width.
    l_out = _round_up(max(l_real, LANE), LANE)
    l_in = l_out + k_max - 1

    # Fused weight, laid out (c_out, k_max*c_in) so the taps fold into the MXU
    # K dimension (column index = k*c_in + c, matching the in-kernel stacking).
    w_eff = _fuse_params(conv_weights, merger_weight, window_sizes, c_in, c_out)
    w2 = jnp.transpose(w_eff, (1, 0, 2)).reshape(c_out, k_max * c_in)

    # ---- batch-tile sizing ---------------------------------------------------
    # tb*c_in / tb*c_out must be multiples of 8 so the flattened 2-D blocks keep
    # (8,128) tiling without per-element sublane padding.
    t_align = max(_sublane_align(c_in), _sublane_align(c_out))
    # ~6 MiB of x+out block per buffer => ~12 MiB double-buffered: inside v5e's
    # 16 MiB default scoped limit, with headroom on v7x's 64 MiB physical VMEM.
    budget = 6 * 1024 * 1024
    bytes_per_item = 4 * (c_in * l_in + c_out * l_out)
    tb = max(1, min(n, budget // bytes_per_item, 256))
    if n >= 4 * t_align:
        tb = min(tb, pl.cdiv(n, 2))   # keep >= 2 grid steps (v7x has 2 TCs)
    tb = _round_up(tb, t_align)
    nb = pl.cdiv(n, tb)
    tb = _round_up(pl.cdiv(n, nb), t_align)   # rebalance the last tile
    nb = pl.cdiv(n, tb)
    n_pad = nb * tb

    # 'same' zero padding along L (plus right padding up to the lane-dense
    # width), zero batch padding up to a tile multiple, flattened to 2-D.
    x_p = jnp.pad(x.astype(jnp.float32),
                  ((0, n_pad - n), (0, 0), (left, l_in - left - l_real)))
    x_flat = x_p.reshape(n_pad * c_in, l_in)

    grid = (nb,)
    x_spec = pl.BlockSpec((tb * c_in, l_in), lambda i: (i, 0))
    w_spec = pl.BlockSpec((c_out, k_max * c_in), lambda i: (0, 0))
    y_spec = pl.BlockSpec((tb * c_out, l_out), lambda i: (i, 0))
    stat_spec = pl.BlockSpec((1, c_out, 1), lambda i: (i, 0, 0))
    params = pltpu.CompilerParams(
        dimension_semantics=("parallel",),
        vmem_limit_bytes=48 * 1024 * 1024,   # <= v7x physical VMEM (64 MiB)
    )

    # Shape-dependent two-pass structure: recompute the conv when HBM-bound,
    # store the pre-BN activations and do an elementwise pass when MXU-bound.
    flops_per_byte = (2.0 * c_out * k_max * c_in) / (4.0 * (c_in + c_out))
    if force_mode is None:
        mode = ("store" if flops_per_byte > _COMPUTE_BOUND_FLOPS_PER_BYTE
                else "recompute")
    else:
        mode = force_mode
    assert mode in ("recompute", "store")

    scratch = [pltpu.VMEM((c_out, l_out), jnp.float32),
               pltpu.VMEM((c_out, l_out), jnp.float32)]
    stat_shape = jax.ShapeDtypeStruct((nb, c_out, 1), jnp.float32)

    # --- pass 1: conv tiles -> per-tile per-channel partial statistics --------
    if mode == "recompute":
        part_sum, part_sq = pl.pallas_call(
            _make_stats_kernel(c_in, c_out, k_max, l_real, l_out, tb,
                               store_y=False),
            out_shape=(stat_shape, stat_shape),
            grid=grid,
            in_specs=[x_spec, w_spec],
            out_specs=(stat_spec, stat_spec),
            scratch_shapes=scratch,
            compiler_params=params,
        )(x_flat, w2)
        y_flat = None
    else:
        y_flat, part_sum, part_sq = pl.pallas_call(
            _make_stats_kernel(c_in, c_out, k_max, l_real, l_out, tb,
                               store_y=True),
            out_shape=(jax.ShapeDtypeStruct((n_pad * c_out, l_out), jnp.float32),
                       stat_shape, stat_shape),
            grid=grid,
            in_specs=[x_spec, w_spec],
            out_specs=(y_spec, stat_spec, stat_spec),
            scratch_shapes=scratch,
            compiler_params=params,
        )(x_flat, w2)

    # --- BN statistics: grouped Chan combine of per-tile (count, mean, M2) ----
    rows_real = jnp.minimum(tb, n - jnp.arange(nb) * tb)         # >= 1 per tile
    counts = (rows_real * l_real).astype(jnp.float32)            # (nb,)
    sum_i = part_sum[:, :, 0]                                     # (nb, c_out)
    sq_i = part_sq[:, :, 0]
    mean_i = sum_i / counts[:, None]
    m2_i = jnp.maximum(sq_i - counts[:, None] * mean_i * mean_i, 0.0)
    total = jnp.float32(n * l_real)
    mean = jnp.sum(sum_i, axis=0) / total
    m2 = (jnp.sum(m2_i, axis=0)
          + jnp.sum(counts[:, None] * (mean_i - mean[None, :]) ** 2, axis=0))
    var = m2 / total                                              # biased var
    inv_std = jax.lax.rsqrt(var + BN_EPS)
    scale = (gamma * inv_std).astype(jnp.float32)[:, None]        # (c_out, 1)
    shift = (beta - mean * gamma * inv_std).astype(jnp.float32)[:, None]

    # --- pass 2: folded BN affine + ReLU ---------------------------------------
    if mode == "recompute":
        vec_spec = pl.BlockSpec((c_out, 1), lambda i: (0, 0))
        out_flat = pl.pallas_call(
            _make_conv_bn_relu_kernel(c_in, c_out, k_max, l_out, tb),
            out_shape=jax.ShapeDtypeStruct((n_pad * c_out, l_out), jnp.float32),
            grid=grid,
            in_specs=[x_spec, w_spec, vec_spec, vec_spec],
            out_specs=y_spec,
            compiler_params=params,
        )(x_flat, w2, scale, shift)
    else:
        scale_t = jnp.tile(scale, (tb, 1))   # (tb*c_out, 1), matches row order
        shift_t = jnp.tile(shift, (tb, 1))
        vec_spec = pl.BlockSpec((tb * c_out, 1), lambda i: (0, 0))
        out_flat = pl.pallas_call(
            _bn_relu_kernel,
            out_shape=jax.ShapeDtypeStruct((n_pad * c_out, l_out), jnp.float32),
            grid=grid,
            in_specs=[y_spec, vec_spec, vec_spec],
            out_specs=y_spec,
            input_output_aliases={0: 0},     # overwrite pre-BN y in place
            compiler_params=params,
        )(y_flat, scale_t, shift_t)

    return out_flat.reshape(n_pad, c_out, l_out)[:n, :, :l_real]


def reference_forward(x, conv_weights, conv_biases, merger_weight, merger_bias,
                      gamma, beta, window_sizes):
    """Pure-JAX reference mirroring the PyTorch module (train-mode BN)."""
    dn = ("NCH", "OIH", "NCH")
    ys = []
    for w_s, b_s, ws in zip(conv_weights, conv_biases, window_sizes):
        left_s = (ws - 1) // 2
        y = jax.lax.conv_general_dilated(
            x, w_s, window_strides=(1,),
            padding=[(left_s, ws - 1 - left_s)], dimension_numbers=dn)
        ys.append(y + b_s[None, :, None])
    y = jnp.concatenate(ys + [x], axis=1)
    y = jax.lax.conv_general_dilated(y, merger_weight, window_strides=(1,),
                                     padding=[(0, 0)], dimension_numbers=dn)
    y = y + merger_bias[None, :, None]
    mean = jnp.mean(y, axis=(0, 2), keepdims=True)
    var = jnp.mean((y - mean) ** 2, axis=(0, 2), keepdims=True)
    y = (y - mean) * jax.lax.rsqrt(var + BN_EPS)
    y = y * gamma[None, :, None] + beta[None, :, None]
    return jnp.maximum(y, 0.0)


if __name__ == "__main__":
    N, C_IN, C_OUT, L = 2, 4, 8, 16
    WINDOW_SIZES = (3, 5, 7)
    S = len(WINDOW_SIZES)

    keys = jax.random.split(jax.random.PRNGKey(0), 2 * S + 5)
    x = jax.random.normal(keys[0], (N, C_IN, L), dtype=jnp.float32)

    conv_weights, conv_biases = [], []
    for s, w in enumerate(WINDOW_SIZES):
        bound = 1.0 / (C_IN * w) ** 0.5
        conv_weights.append(jax.random.uniform(
            keys[1 + 2 * s], (C_OUT, C_IN, w), jnp.float32, -bound, bound))
        conv_biases.append(jax.random.uniform(
            keys[2 + 2 * s], (C_OUT,), jnp.float32, -bound, bound))
    conv_weights = tuple(conv_weights)
    conv_biases = tuple(conv_biases)

    c_merge_in = S * C_OUT + C_IN
    mbound = 1.0 / c_merge_in ** 0.5
    merger_weight = jax.random.uniform(
        keys[2 * S + 1], (C_OUT, c_merge_in, 1), jnp.float32, -mbound, mbound)
    merger_bias = jax.random.uniform(
        keys[2 * S + 2], (C_OUT,), jnp.float32, -mbound, mbound)
    gamma = 1.0 + 0.1 * jax.random.normal(keys[2 * S + 3], (C_OUT,), jnp.float32)
    beta = 0.1 * jax.random.normal(keys[2 * S + 4], (C_OUT,), jnp.float32)

    ref = reference_forward(x, conv_weights, conv_biases, merger_weight,
                            merger_bias, gamma, beta, WINDOW_SIZES)

    # Auto mode (HBM-bound at these shapes -> recompute path).
    out = multiscale_conv_block_forward(
        x, conv_weights, conv_biases, merger_weight, merger_bias, gamma, beta,
        window_sizes=WINDOW_SIZES)
    out = jax.block_until_ready(out)
    assert out.shape == (N, C_OUT, L), out.shape
    err = float(jnp.max(jnp.abs(out - ref)))
    assert jnp.allclose(out, ref, atol=1e-4, rtol=1e-4), err

    # Also exercise the store-pre-BN path (used when the conv is MXU-bound).
    out_s = multiscale_conv_block_forward(
        x, conv_weights, conv_biases, merger_weight, merger_bias, gamma, beta,
        window_sizes=WINDOW_SIZES, force_mode="store")
    out_s = jax.block_until_ready(out_s)
    err_s = float(jnp.max(jnp.abs(out_s - ref)))
    assert jnp.allclose(out_s, ref, atol=1e-4, rtol=1e-4), err_s

    print("KERNEL_OK")
</pallas_src>

<mosaic_0001>
module attributes {stable_mosaic.version = 11 : i64} {
  func.func @kernel(%arg0: i32, %arg1: memref<8x134xf32, #tpu.memory_space<vmem>>, %arg2: memref<8x28xf32, #tpu.memory_space<vmem>>, %arg3: memref<8x1xf32, #tpu.memory_space<vmem>>, %arg4: memref<8x1xf32, #tpu.memory_space<vmem>>, %arg5: memref<16x128xf32, #tpu.memory_space<vmem>>) attributes {dimension_semantics = [#tpu.dimension_semantics<parallel>], iteration_bounds = array<i64: 1>, scalar_prefetch = 0 : i64, scratch_operands = 0 : i64, tpu.core_type = #tpu.core_type<tc>, window_params = [{transform_indices = @transform_0, window_bounds = array<i64: 8, 134>}, {pipeline_mode = #tpu.pipeline_mode<synchronous>, transform_indices = @transform_1, window_bounds = array<i64: 8, 28>}, {pipeline_mode = #tpu.pipeline_mode<synchronous>, transform_indices = @transform_2, window_bounds = array<i64: 8, 1>}, {pipeline_mode = #tpu.pipeline_mode<synchronous>, transform_indices = @transform_3, window_bounds = array<i64: 8, 1>}, {transform_indices = @transform_4, window_bounds = array<i64: 16, 128>}]} {
    %c0 = arith.constant 0 : index
    %c0_0 = arith.constant 0 : index
    %0 = vector.load %arg2[%c0, %c0_0] : memref<8x28xf32, #tpu.memory_space<vmem>>, vector<8x28xf32>
    %c0_1 = arith.constant 0 : index
    %c0_2 = arith.constant 0 : index
    %1 = vector.load %arg3[%c0_1, %c0_2] : memref<8x1xf32, #tpu.memory_space<vmem>>, vector<8x1xf32>
    %2 = vector.shape_cast %1 : vector<8x1xf32> to vector<8x1xf32>
    %3 = vector.broadcast %2 : vector<8x1xf32> to vector<8x128xf32>
    %c0_3 = arith.constant 0 : index
    %c0_4 = arith.constant 0 : index
    %4 = vector.load %arg4[%c0_3, %c0_4] : memref<8x1xf32, #tpu.memory_space<vmem>>, vector<8x1xf32>
    %5 = vector.shape_cast %4 : vector<8x1xf32> to vector<8x1xf32>
    %6 = vector.broadcast %5 : vector<8x1xf32> to vector<8x128xf32>
    %c0_5 = arith.constant 0 : index
    %c0_6 = arith.constant 0 : index
    %7 = vector.load %arg1[%c0_5, %c0_6] : memref<8x134xf32, #tpu.memory_space<vmem>>, vector<4x134xf32>
    %8 = vector.extract_strided_slice %7 {offsets = [0, 0], sizes = [4, 128], strides = [1, 1]} : vector<4x134xf32> to vector<4x128xf32>
    %9 = vector.extract_strided_slice %7 {offsets = [0, 1], sizes = [4, 128], strides = [1, 1]} : vector<4x134xf32> to vector<4x128xf32>
    %10 = vector.extract_strided_slice %7 {offsets = [0, 2], sizes = [4, 128], strides = [1, 1]} : vector<4x134xf32> to vector<4x128xf32>
    %11 = vector.extract_strided_slice %7 {offsets = [0, 3], sizes = [4, 128], strides = [1, 1]} : vector<4x134xf32> to vector<4x128xf32>
    %12 = vector.extract_strided_slice %7 {offsets = [0, 4], sizes = [4, 128], strides = [1, 1]} : vector<4x134xf32> to vector<4x128xf32>
    %13 = vector.extract_strided_slice %7 {offsets = [0, 5], sizes = [4, 128], strides = [1, 1]} : vector<4x134xf32> to vector<4x128xf32>
    %14 = vector.extract_strided_slice %7 {offsets = [0, 6], sizes = [4, 128], strides = [1, 1]} : vector<4x134xf32> to vector<4x128xf32>
    %15 = tpu.concatenate %8, %9, %10, %11, %12, %13, %14 in 0 : vector<4x128xf32>, vector<4x128xf32>, vector<4x128xf32>, vector<4x128xf32>, vector<4x128xf32>, vector<4x128xf32>, vector<4x128xf32> -> vector<28x128xf32>
    %cst = arith.constant dense<0.000000e+00> : vector<8x128xf32>
    %16 = tpu.matmul %0, %15, %cst {dimension_numbers = #tpu.dot_dimension_numbers<[1], [0], [0], [1], [0, 0, 1, 1], [], []>} : vector<8x28xf32>, vector<28x128xf32>, vector<8x128xf32> -> vector<8x128xf32>
    %17 = arith.mulf %16, %3 : vector<8x128xf32>
    %18 = arith.addf %17, %6 : vector<8x128xf32>
    %cst_7 = arith.constant 0.000000e+00 : f32
    %19 = vector.broadcast %cst_7 : f32 to vector<8x128xf32>
    %20 = arith.maximumf %18, %19 : vector<8x128xf32>
    %c0_8 = arith.constant 0 : index
    %c0_9 = arith.constant 0 : index
    %21 = vector.load %arg5[%c0_8, %c0_9] : memref<16x128xf32, #tpu.memory_space<vmem>>, vector<8x128xf32>
    tpu.vector_store %arg5[%c0_8, %c0_9], %20 {strides = array<i32>} : memref<16x128xf32, #tpu.memory_space<vmem>>, vector<8x128xf32>,
    %c4 = arith.constant 4 : index
    %c0_10 = arith.constant 0 : index
    %22 = vector.load %arg1[%c4, %c0_10] : memref<8x134xf32, #tpu.memory_space<vmem>>, vector<4x134xf32>
    %23 = vector.extract_strided_slice %22 {offsets = [0, 0], sizes = [4, 128], strides = [1, 1]} : vector<4x134xf32> to vector<4x128xf32>
    %24 = vector.extract_strided_slice %22 {offsets = [0, 1], sizes = [4, 128], strides = [1, 1]} : vector<4x134xf32> to vector<4x128xf32>
    %25 = vector.extract_strided_slice %22 {offsets = [0, 2], sizes = [4, 128], strides = [1, 1]} : vector<4x134xf32> to vector<4x128xf32>
    %26 = vector.extract_strided_slice %22 {offsets = [0, 3], sizes = [4, 128], strides = [1, 1]} : vector<4x134xf32> to vector<4x128xf32>
    %27 = vector.extract_strided_slice %22 {offsets = [0, 4], sizes = [4, 128], strides = [1, 1]} : vector<4x134xf32> to vector<4x128xf32>
    %28 = vector.extract_strided_slice %22 {offsets = [0, 5], sizes = [4, 128], strides = [1, 1]} : vector<4x134xf32> to vector<4x128xf32>
    %29 = vector.extract_strided_slice %22 {offsets = [0, 6], sizes = [4, 128], strides = [1, 1]} : vector<4x134xf32> to vector<4x128xf32>
    %30 = tpu.concatenate %23, %24, %25, %26, %27, %28, %29 in 0 : vector<4x128xf32>, vector<4x128xf32>, vector<4x128xf32>, vector<4x128xf32>, vector<4x128xf32>, vector<4x128xf32>, vector<4x128xf32> -> vector<28x128xf32>
    %cst_11 = arith.constant dense<0.000000e+00> : vector<8x128xf32>
    %31 = tpu.matmul %0, %30, %cst_11 {dimension_numbers = #tpu.dot_dimension_numbers<[1], [0], [0], [1], [0, 0, 1, 1], [], []>} : vector<8x28xf32>, vector<28x128xf32>, vector<8x128xf32> -> vector<8x128xf32>
    %32 = arith.mulf %31, %3 : vector<8x128xf32>
    %33 = arith.addf %32, %6 : vector<8x128xf32>
    %cst_12 = arith.constant 0.000000e+00 : f32
    %34 = vector.broadcast %cst_12 : f32 to vector<8x128xf32>
    %35 = arith.maximumf %33, %34 : vector<8x128xf32>
    %c8 = arith.constant 8 : index
    %c0_13 = arith.constant 0 : index
    %36 = vector.load %arg5[%c8, %c0_13] : memref<16x128xf32, #tpu.memory_space<vmem>>, vector<8x128xf32>
    tpu.vector_store %arg5[%c8, %c0_13], %35 {strides = array<i32>} : memref<16x128xf32, #tpu.memory_space<vmem>>, vector<8x128xf32>,
    return
  }
  func.func @transform_0(%arg0: i32) -> (i32, i32) {
    %c0_i32 = arith.constant 0 : i32
    %c0_i32_0 = arith.constant 0 : i32
    return %arg0, %c0_i32 : i32, i32
  }
  func.func @transform_1(%arg0: i32) -> (i32, i32) {
    %c0_i32 = arith.constant 0 : i32
    %c0_i32_0 = arith.constant 0 : i32
    %c0_i32_1 = arith.constant 0 : i32
    return %c0_i32, %c0_i32_0 : i32, i32
  }
  func.func @transform_2(%arg0: i32) -> (i32, i32) {
    %c0_i32 = arith.constant 0 : i32
    %c0_i32_0 = arith.constant 0 : i32
    %c0_i32_1 = arith.constant 0 : i32
    return %c0_i32, %c0_i32_0 : i32, i32
  }
  func.func @transform_3(%arg0: i32) -> (i32, i32) {
    %c0_i32 = arith.constant 0 : i32
    %c0_i32_0 = arith.constant 0 : i32
    %c0_i32_1 = arith.constant 0 : i32
    return %c0_i32, %c0_i32_0 : i32, i32
  }
  func.func @transform_4(%arg0: i32) -> (i32, i32) {
    %c0_i32 = arith.constant 0 : i32
    %c0_i32_0 = arith.constant 0 : i32
    return %arg0, %c0_i32 : i32, i32
  }
}

module attributes {stable_mosaic.version = 11 : i64} {
  func.func @kernel(%arg0: i32, %arg1: memref<8x134xf32, #tpu.memory_space<vmem>>, %arg2: memref<8x28xf32, #tpu.memory_space<vmem>>, %arg3: memref<1x8x1xf32, #tpu.memory_space<vmem>>, %arg4: memref<1x8x1xf32, #tpu.memory_space<vmem>>, %arg5: memref<8x128xf32, #tpu.memory_space<vmem>>, %arg6: memref<8x128xf32, #tpu.memory_space<vmem>>) attributes {dimension_semantics = [#tpu.dimension_semantics<parallel>], iteration_bounds = array<i64: 1>, scalar_prefetch = 0 : i64, scratch_operands = 2 : i64, tpu.core_type = #tpu.core_type<tc>, window_params = [{transform_indices = @transform_0, window_bounds = array<i64: 8, 134>}, {pipeline_mode = #tpu.pipeline_mode<synchronous>, transform_indices = @transform_1, window_bounds = array<i64: 8, 28>}, {transform_indices = @transform_2, window_bounds = array<i64: 1, 8, 1>}, {transform_indices = @transform_3, window_bounds = array<i64: 1, 8, 1>}]} {
    %c0 = arith.constant 0 : index
    %c0_0 = arith.constant 0 : index
    %0 = vector.load %arg2[%c0, %c0_0] : memref<8x28xf32, #tpu.memory_space<vmem>>, vector<8x28xf32>
    %cst = arith.constant 0.000000e+00 : f32
    %1 = vector.broadcast %cst : f32 to vector<8x128xf32>
    %c0_1 = arith.constant 0 : index
    %c0_2 = arith.constant 0 : index
    %2 = vector.load %arg5[%c0_1, %c0_2] : memref<8x128xf32, #tpu.memory_space<vmem>>, vector<8x128xf32>
    tpu.vector_store %arg5[%c0_1, %c0_2], %1 {strides = array<i32>} : memref<8x128xf32, #tpu.memory_space<vmem>>, vector<8x128xf32>,
    %cst_3 = arith.constant 0.000000e+00 : f32
    %3 = vector.broadcast %cst_3 : f32 to vector<8x128xf32>
    %c0_4 = arith.constant 0 : index
    %c0_5 = arith.constant 0 : index
    %4 = vector.load %arg6[%c0_4, %c0_5] : memref<8x128xf32, #tpu.memory_space<vmem>>, vector<8x128xf32>
    tpu.vector_store %arg6[%c0_4, %c0_5], %3 {strides = array<i32>} : memref<8x128xf32, #tpu.memory_space<vmem>>, vector<8x128xf32>,
    %c0_6 = arith.constant 0 : index
    %c0_7 = arith.constant 0 : index
    %5 = vector.load %arg1[%c0_6, %c0_7] : memref<8x134xf32, #tpu.memory_space<vmem>>, vector<4x134xf32>
    %6 = vector.extract_strided_slice %5 {offsets = [0, 0], sizes = [4, 128], strides = [1, 1]} : vector<4x134xf32> to vector<4x128xf32>
    %7 = vector.extract_strided_slice %5 {offsets = [0, 1], sizes = [4, 128], strides = [1, 1]} : vector<4x134xf32> to vector<4x128xf32>
    %8 = vector.extract_strided_slice %5 {offsets = [0, 2], sizes = [4, 128], strides = [1, 1]} : vector<4x134xf32> to vector<4x128xf32>
    %9 = vector.extract_strided_slice %5 {offsets = [0, 3], sizes = [4, 128], strides = [1, 1]} : vector<4x134xf32> to vector<4x128xf32>
    %10 = vector.extract_strided_slice %5 {offsets = [0, 4], sizes = [4, 128], strides = [1, 1]} : vector<4x134xf32> to vector<4x128xf32>
    %11 = vector.extract_strided_slice %5 {offsets = [0, 5], sizes = [4, 128], strides = [1, 1]} : vector<4x134xf32> to vector<4x128xf32>
    %12 = vector.extract_strided_slice %5 {offsets = [0, 6], sizes = [4, 128], strides = [1, 1]} : vector<4x134xf32> to vector<4x128xf32>
    %13 = tpu.concatenate %6, %7, %8, %9, %10, %11, %12 in 0 : vector<4x128xf32>, vector<4x128xf32>, vector<4x128xf32>, vector<4x128xf32>, vector<4x128xf32>, vector<4x128xf32>, vector<4x128xf32> -> vector<28x128xf32>
    %cst_8 = arith.constant dense<0.000000e+00> : vector<8x128xf32>
    %14 = tpu.matmul %0, %13, %cst_8 {dimension_numbers = #tpu.dot_dimension_numbers<[1], [0], [0], [1], [0, 0, 1, 1], [], []>} : vector<8x28xf32>, vector<28x128xf32>, vector<8x128xf32> -> vector<8x128xf32>
    %c0_9 = arith.constant 0 : index
    %c0_10 = arith.constant 0 : index
    %15 = vector.load %arg5[%c0_9, %c0_10] : memref<8x128xf32, #tpu.memory_space<vmem>>, vector<8x128xf32>
    %16 = arith.addf %15, %14 : vector<8x128xf32>
    %c0_11 = arith.constant 0 : index
    %c0_12 = arith.constant 0 : index
    %17 = vector.load %arg5[%c0_11, %c0_12] : memref<8x128xf32, #tpu.memory_space<vmem>>, vector<8x128xf32>
    tpu.vector_store %arg5[%c0_11, %c0_12], %16 {strides = array<i32>} : memref<8x128xf32, #tpu.memory_space<vmem>>, vector<8x128xf32>,
    %c0_13 = arith.constant 0 : index
    %c0_14 = arith.constant 0 : index
    %18 = vector.load %arg6[%c0_13, %c0_14] : memref<8x128xf32, #tpu.memory_space<vmem>>, vector<8x128xf32>
    %19 = arith.mulf %14, %14 : vector<8x128xf32>
    %20 = arith.addf %18, %19 : vector<8x128xf32>
    %c0_15 = arith.constant 0 : index
    %c0_16 = arith.constant 0 : index
    %21 = vector.load %arg6[%c0_15, %c0_16] : memref<8x128xf32, #tpu.memory_space<vmem>>, vector<8x128xf32>
    tpu.vector_store %arg6[%c0_15, %c0_16], %20 {strides = array<i32>} : memref<8x128xf32, #tpu.memory_space<vmem>>, vector<8x128xf32>,
    %c4 = arith.constant 4 : index
    %c0_17 = arith.constant 0 : index
    %22 = vector.load %arg1[%c4, %c0_17] : memref<8x134xf32, #tpu.memory_space<vmem>>, vector<4x134xf32>
    %23 = vector.extract_strided_slice %22 {offsets = [0, 0], sizes = [4, 128], strides = [1, 1]} : vector<4x134xf32> to vector<4x128xf32>
    %24 = vector.extract_strided_slice %22 {offsets = [0, 1], sizes = [4, 128], strides = [1, 1]} : vector<4x134xf32> to vector<4x128xf32>
    %25 = vector.extract_strided_slice %22 {offsets = [0, 2], sizes = [4, 128], strides = [1, 1]} : vector<4x134xf32> to vector<4x128xf32>
    %26 = vector.extract_strided_slice %22 {offsets = [0, 3], sizes = [4, 128], strides = [1, 1]} : vector<4x134xf32> to vector<4x128xf32>
    %27 = vector.extract_strided_slice %22 {offsets = [0, 4], sizes = [4, 128], strides = [1, 1]} : vector<4x134xf32> to vector<4x128xf32>
    %28 = vector.extract_strided_slice %22 {offsets = [0, 5], sizes = [4, 128], strides = [1, 1]} : vector<4x134xf32> to vector<4x128xf32>
    %29 = vector.extract_strided_slice %22 {offsets = [0, 6], sizes = [4, 128], strides = [1, 1]} : vector<4x134xf32> to vector<4x128xf32>
    %30 = tpu.concatenate %23, %24, %25, %26, %27, %28, %29 in 0 : vector<4x128xf32>, vector<4x128xf32>, vector<4x128xf32>, vector<4x128xf32>, vector<4x128xf32>, vector<4x128xf32>, vector<4x128xf32> -> vector<28x128xf32>
    %cst_18 = arith.constant dense<0.000000e+00> : vector<8x128xf32>
    %31 = tpu.matmul %0, %30, %cst_18 {dimension_numbers = #tpu.dot_dimension_numbers<[1], [0], [0], [1], [0, 0, 1, 1], [], []>} : vector<8x28xf32>, vector<28x128xf32>, vector<8x128xf32> -> vector<8x128xf32>
    %c0_19 = arith.constant 0 : index
    %c0_20 = arith.constant 0 : index
    %32 = vector.load %arg5[%c0_19, %c0_20] : memref<8x128xf32, #tpu.memory_space<vmem>>, vector<8x128xf32>
    %33 = arith.addf %32, %31 : vector<8x128xf32>
    %c0_21 = arith.constant 0 : index
    %c0_22 = arith.constant 0 : index
    %34 = vector.load %arg5[%c0_21, %c0_22] : memref<8x128xf32, #tpu.memory_space<vmem>>, vector<8x128xf32>
    tpu.vector_store %arg5[%c0_21, %c0_22], %33 {strides = array<i32>} : memref<8x128xf32, #tpu.memory_space<vmem>>, vector<8x128xf32>,
    %c0_23 = arith.constant 0 : index
    %c0_24 = arith.constant 0 : index
    %35 = vector.load %arg6[%c0_23, %c0_24] : memref<8x128xf32, #tpu.memory_space<vmem>>, vector<8x128xf32>
    %36 = arith.mulf %31, %31 : vector<8x128xf32>
    %37 = arith.addf %35, %36 : vector<8x128xf32>
    %c0_25 = arith.constant 0 : index
    %c0_26 = arith.constant 0 : index
    %38 = vector.load %arg6[%c0_25, %c0_26] : memref<8x128xf32, #tpu.memory_space<vmem>>, vector<8x128xf32>
    tpu.vector_store %arg6[%c0_25, %c0_26], %37 {strides = array<i32>} : memref<8x128xf32, #tpu.memory_space<vmem>>, vector<8x128xf32>,
    %c0_27 = arith.constant 0 : index
    %c0_28 = arith.constant 0 : index
    %39 = vector.load %arg5[%c0_27, %c0_28] : memref<8x128xf32, #tpu.memory_space<vmem>>, vector<8x128xf32>
    %c0_29 = arith.constant 0 : index
    %c0_30 = arith.constant 0 : index
    %40 = vector.load %arg6[%c0_29, %c0_30] : memref<8x128xf32, #tpu.memory_space<vmem>>, vector<8x128xf32>
    %41 = tpu.iota {dimensions = array<i32: 1>} : vector<8x128xi32>
    %c16_i32 = arith.constant 16 : i32
    %42 = vector.broadcast %c16_i32 : i32 to vector<8x128xi32>
    %43 = arith.cmpi slt, %41, %42 : vector<8x128xi32>
    %cst_31 = arith.constant 0.000000e+00 : f32
    %44 = vector.broadcast %cst_31 : f32 to vector<8x128xf32>
    %45 = arith.select %43, %39, %44 : vector<8x128xi1>, vector<8x128xf32>
    %cst_32 = arith.constant 0.000000e+00 : f32
    %46 = vector.broadcast %cst_32 : f32 to vector<8x128xf32>
    %47 = arith.select %43, %40, %46 : vector<8x128xi1>, vector<8x128xf32>
    %cst_33 = arith.constant dense<0.000000e+00> : vector<8xf32>
    %48 = vector.multi_reduction <add>, %45, %cst_33 [1] : vector<8x128xf32> to vector<8xf32>
    %49 = vector.shape_cast %48 : vector<8xf32> to vector<8x1xf32>
    %c0_34 = arith.constant 0 : index
    %c0_35 = arith.constant 0 : index
    %c0_36 = arith.constant 0 : index
    %50 = vector.load %arg3[%c0_34, %c0_35, %c0_36] : memref<1x8x1xf32, #tpu.memory_space<vmem>>, vector<1x8x1xf32>
    %51 = vector.shape_cast %50 : vector<1x8x1xf32> to vector<8x1xf32>
    %52 = vector.shape_cast %49 : vector<8x1xf32> to vector<1x8x1xf32>
    tpu.vector_store %arg3[%c0_34, %c0_35, %c0_36], %52 {strides = array<i32>} : memref<1x8x1xf32, #tpu.memory_space<vmem>>, vector<1x8x1xf32>,
    %cst_37 = arith.constant dense<0.000000e+00> : vector<8xf32>
    %53 = vector.multi_reduction <add>, %47, %cst_37 [1] : vector<8x128xf32> to vector<8xf32>
    %54 = vector.shape_cast %53 : vector<8xf32> to vector<8x1xf32>
    %c0_38 = arith.constant 0 : index
    %c0_39 = arith.constant 0 : index
    %c0_40 = arith.constant 0 : index
    %55 = vector.load %arg4[%c0_38, %c0_39, %c0_40] : memref<1x8x1xf32, #tpu.memory_space<vmem>>, vector<1x8x1xf32>
    %56 = vector.shape_cast %55 : vector<1x8x1xf32> to vector<8x1xf32>
    %57 = vector.shape_cast %54 : vector<8x1xf32> to vector<1x8x1xf32>
    tpu.vector_store %arg4[%c0_38, %c0_39, %c0_40], %57 {strides = array<i32>} : memref<1x8x1xf32, #tpu.memory_space<vmem>>, vector<1x8x1xf32>,
    return
  }
  func.func @transform_0(%arg0: i32) -> (i32, i32) {
    %c0_i32 = arith.constant 0 : i32
    %c0_i32_0 = arith.constant 0 : i32
    return %arg0, %c0_i32 : i32, i32
  }
  func.func @transform_1(%arg0: i32) -> (i32, i32) {
    %c0_i32 = arith.constant 0 : i32
    %c0_i32_0 = arith.constant 0 : i32
    %c0_i32_1 = arith.constant 0 : i32
    return %c0_i32, %c0_i32_0 : i32, i32
  }
  func.func @transform_2(%arg0: i32) -> (i32, i32, i32) {
    %c0_i32 = arith.constant 0 : i32
    %c0_i32_0 = arith.constant 0 : i32
    %c0_i32_1 = arith.constant 0 : i32
    return %arg0, %c0_i32, %c0_i32_0 : i32, i32, i32
  }
  func.func @transform_3(%arg0: i32) -> (i32, i32, i32) {
    %c0_i32 = arith.constant 0 : i32
    %c0_i32_0 = arith.constant 0 : i32
    %c0_i32_1 = arith.constant 0 : i32
    return %arg0, %c0_i32, %c0_i32_0 : i32, i32, i32
  }
}

</mosaic_0001>

<llo_original>
// kernel: multiscale_conv_block_forward.2
$region0: #{multiscale_conv_block_forward.2}
  #allocation0 [shape = 'u32[]', space=smem, size = 0x4, offset = 0x4, fixed_abs, tag = 'smem constant byte address 0x4 - core index']
  #allocation1 [shape = 'u32[72,128]{1,0:T(1,128)}', space=vmem, size = 0x9000, scoped, tag = 'internal scratch']
  #allocation2 [shape = 'f32[8,128]{1,0:T(8,128)}', space=vmem, size = 0x1000, scoped, tag = 'scratch operand']
  #allocation3 [shape = 'f32[8,128]{1,0:T(8,128)}', space=vmem, size = 0x1000, scoped, tag = 'scratch operand']
  %s0 = inlined_call_operand.vmem [shape: f32[8,134], index: 0, kind: input, shape index: {}]
  %s1 = inlined_call_operand.vmem [shape: f32[8,28], index: 1, kind: input, shape index: {}]
  %s2 = inlined_call_operand.vmem [shape: f32[1,8,1], index: 2, kind: output, shape index: {0}]
  %s3 = inlined_call_operand.vmem [shape: f32[1,8,1], index: 3, kind: output, shape index: {1}]
  %4 = xla_tuple %s2, %s3
  %s5 = sld [smem:[#allocation0]]
  $region26: #{multiscale_conv_block_forward.2} parent=0
    _
  %s7 = ssub.s32 1, %s5
  %s8 = scalar_select 0, %s7, %s5
  // Predicated region
  $region2: #{multiscale_conv_block_forward.2} parent=0 // pred_check
    _
  $region3: #{multiscale_conv_block_forward.2} parent=0 // pred_check_branch
    %10 = sbr.rel (0) target = $region5
  $region4: #{multiscale_conv_block_forward.2} parent=0 // pred_region
    _
  $region5: #{multiscale_conv_block_forward.2} parent=0 // pred_fallthru
    _
  // Predicated region
  $region6: #{multiscale_conv_block_forward.2} parent=0 // pred_check
    _
  $region7: #{multiscale_conv_block_forward.2} parent=0 // pred_check_branch
    %12 = sbr.rel (0) target = $region9
  $region8: #{multiscale_conv_block_forward.2} parent=0 // pred_region
    _
  $region9: #{multiscale_conv_block_forward.2} parent=0 // pred_fallthru
    _
  %v13 = vld [vmem:[%s1] sm:$0xff]
  %14 = vst [vmem:[#allocation2] sm:$0xff] 0.0
  %15 = vst [vmem:[#allocation3] sm:$0xff] 0.0
  %v16 = vld [vmem:[%s0] sm:$0xf]
  %v17 = vld [vmem:[%s0 + $0x8] sm:$0xf]
  %v20 = vrot.slane %v16, 4
  %v21 = vrot.slane %v17, 4
  %22 = vrot.lane.b32.xlu0 %v20, 127
  %v23 = vpop.permute.xlu0 %22
  %24 = vrot.lane.b32.xlu0 %v21, 127
  %v25 = vpop.permute.xlu0 %24
  %vm26 = vcmask 1039360
  %v27 = vsel %vm26, %v23, %v25
  %29 = vrot.lane.b32.xlu0 %v16, 126
  %v30 = vpop.permute.xlu0 %29
  %31 = vrot.lane.b32.xlu0 %v17, 126
  %v32 = vpop.permute.xlu0 %31
  %vm33 = vcmask 1031168
  %v34 = vsel %vm33, %v30, %v32
  %36 = vrot.lane.b32.xlu0 %v20, 125
  %v37 = vpop.permute.xlu0 %36
  %38 = vrot.lane.b32.xlu0 %v21, 125
  %v39 = vpop.permute.xlu0 %38
  %vm40 = vcmask 1022976
  %v41 = vsel %vm40, %v37, %v39
  %43 = vrot.lane.b32.xlu0 %v16, 124
  %v44 = vpop.permute.xlu0 %43
  %45 = vrot.lane.b32.xlu0 %v17, 124
  %v46 = vpop.permute.xlu0 %45
  %vm47 = vcmask 1014784
  %v48 = vsel %vm47, %v44, %v46
  %50 = vrot.lane.b32.xlu0 %v20, 123
  %v51 = vpop.permute.xlu0 %50
  %52 = vrot.lane.b32.xlu0 %v21, 123
  %v53 = vpop.permute.xlu0 %52
  %vm54 = vcmask 1006592
  %v55 = vsel %vm54, %v51, %v53
  %57 = vrot.lane.b32.xlu0 %v16, 122
  %v58 = vpop.permute.xlu0 %57
  %59 = vrot.lane.b32.xlu0 %v17, 122
  %v60 = vpop.permute.xlu0 %59
  %vm61 = vcmask 998400
  %v62 = vsel %vm61, %v58, %v60
  %vm63 = vcmask 1043456
  %v64 = vsel %vm63, %v16, %v27
  %v65 = vsel %vm63, %v34, %v41
  %v66 = vsel %vm63, %v48, %v55
  %vm67 = vcmask 228352
  %v69 = vsel %vm67, %v13, 0
  %v71 = vsel %vm63, %v62, 0
  %73 = vmatpush.msra.mxu0 0.0
  %74 = vmatpush.msra.mxu0 0.0
  %75 = vmatpush.msra.mxu0 0.0
  %76 = vmatpush.msra.mxu0 0.0
  %77 = vmatpush.msra.mxu0 0.0
  %78 = vmatpush.msra.mxu0 0.0
  %79 = vmatpush.msra.mxu0 0.0
  %80 = vmatpush.msra.mxu0 0.0
  %81 = vmatpush.msra.mxu0 0.0
  %82 = vmatpush.msra.mxu0 0.0
  %83 = vmatpush.msra.mxu0 0.0
  %84 = vmatpush.msra.mxu0 0.0
  %85 = vmatpush.msra.mxu0 %v71
  %86 = vmatpush.msra.mxu0 %v66
  %87 = vmatpush.msra.mxu0 %v65
  %88 = vmatpush.msra.mxu0 %v64
  %89 = vmatmul.f32.gmra.mxu0 %v69
  %v90 = vpop.f32.mrf.mxu0
  %v91 = vadd.f32 0.0, %v90
  %92 = vdwg.mxu0
  %v93 = vld [vmem:[#allocation2] sm:$0xff]
  %v94 = vadd.f32 %v93, %v91
  %95 = vst [vmem:[#allocation2] sm:$0xff] %v94
  %v96 = vld [vmem:[#allocation3] sm:$0xff]
  %v97 = vmul.f32 %v91, %v91
  %v98 = vadd.f32 %v96, %v97
  %99 = vst [vmem:[#allocation3] sm:$0xff] %v98
  %v100 = vld [vmem:[%s0] sm:$0xf0]
  %v101 = vld [vmem:[%s0 + $0x8] sm:$0xf0]
  %v103 = vrot.slane %v100, 4
  %106 = vrot.lane.b32.xlu0 %v100, 127
  %v107 = vpop.permute.xlu0 %106
  %108 = vrot.lane.b32.xlu0 %v101, 127
  %v109 = vpop.permute.xlu0 %108
  %v110 = vsel %vm26, %v107, %v109
  %v112 = vrot.slane %v101, 4
  %113 = vrot.lane.b32.xlu0 %v103, 126
  %v114 = vpop.permute.xlu0 %113
  %115 = vrot.lane.b32.xlu0 %v112, 126
  %v116 = vpop.permute.xlu0 %115
  %v117 = vsel %vm33, %v114, %v116
  %119 = vrot.lane.b32.xlu0 %v100, 125
  %v120 = vpop.permute.xlu0 %119
  %121 = vrot.lane.b32.xlu0 %v101, 125
  %v122 = vpop.permute.xlu0 %121
  %v123 = vsel %vm40, %v120, %v122
  %125 = vrot.lane.b32.xlu0 %v103, 124
  %v126 = vpop.permute.xlu0 %125
  %127 = vrot.lane.b32.xlu0 %v112, 124
  %v128 = vpop.permute.xlu0 %127
  %v129 = vsel %vm47, %v126, %v128
  %131 = vrot.lane.b32.xlu0 %v100, 123
  %v132 = vpop.permute.xlu0 %131
  %133 = vrot.lane.b32.xlu0 %v101, 123
  %v134 = vpop.permute.xlu0 %133
  %v135 = vsel %vm54, %v132, %v134
  %137 = vrot.lane.b32.xlu0 %v103, 122
  %v138 = vpop.permute.xlu0 %137
  %139 = vrot.lane.b32.xlu0 %v112, 122
  %v140 = vpop.permute.xlu0 %139
  %v141 = vsel %vm61, %v138, %v140
  %v142 = vsel %vm63, %v103, %v110
  %v143 = vsel %vm63, %v117, %v123
  %v144 = vsel %vm63, %v129, %v135
  %v145 = vsel %vm63, %v141, 0
  %147 = vmatpush.msra.mxu0 0.0
  %148 = vmatpush.msra.mxu0 0.0
  %149 = vmatpush.msra.mxu0 0.0
  %150 = vmatpush.msra.mxu0 0.0
  %151 = vmatpush.msra.mxu0 0.0
  %152 = vmatpush.msra.mxu0 0.0
  %153 = vmatpush.msra.mxu0 0.0
  %154 = vmatpush.msra.mxu0 0.0
  %155 = vmatpush.msra.mxu0 0.0
  %156 = vmatpush.msra.mxu0 0.0
  %157 = vmatpush.msra.mxu0 0.0
  %158 = vmatpush.msra.mxu0 0.0
  %159 = vmatpush.msra.mxu0 %v145
  %160 = vmatpush.msra.mxu0 %v144
  %161 = vmatpush.msra.mxu0 %v143
  %162 = vmatpush.msra.mxu0 %v142
  %163 = vmatmul.f32.gmra.mxu0 %v69
  %v164 = vpop.f32.mrf.mxu0
  %v165 = vadd.f32 0.0, %v164
  %166 = vdwg.mxu0
  %v167 = vld [vmem:[#allocation2] sm:$0xff]
  %v168 = vadd.f32 %v167, %v165
  %169 = vst [vmem:[#allocation2] sm:$0xff] %v168
  %v170 = vld [vmem:[#allocation3] sm:$0xff]
  %v171 = vmul.f32 %v165, %v165
  %v172 = vadd.f32 %v170, %v171
  %173 = vst [vmem:[#allocation3] sm:$0xff] %v172
  %v174 = vld [vmem:[#allocation2] sm:$0xff]
  %v175 = vld [vmem:[#allocation3] sm:$0xff]
  %v176 = vlaneseq
  %v177 = vand.u32 %v176, 127
  %vm178 = vcmp.lt.s32.totalorder %v177, 16
  %v179 = vsel %vm178, %v174, 0.0
  %v180 = vsel %vm178, %v175, 0.0
  %181 = vadd.xlane.f32.xlu0 %v179
  %v182 = vpop.xlane.xlu0 %181
  %vm183 = vcmask 7168
  %184 = vst.msk [vmem:[%s2] sm:$0xff] %vm183, %v182
  %185 = vadd.xlane.f32.xlu0 %v180
  %v186 = vpop.xlane.xlu0 %185
  %187 = vst.msk [vmem:[%s3] sm:$0xff] %vm183, %v186
  // Predicated region
  $region10: #{multiscale_conv_block_forward.2} parent=0 // pred_check
    _
  $region11: #{multiscale_conv_block_forward.2} parent=0 // pred_check_branch
    %189 = sbr.rel (0) target = $region13
  $region12: #{multiscale_conv_block_forward.2} parent=0 // pred_region
    _
  $region13: #{multiscale_conv_block_forward.2} parent=0 // pred_fallthru
    _
  // Predicated region
  $region14: #{multiscale_conv_block_forward.2} parent=0 // pred_check
    _
  $region15: #{multiscale_conv_block_forward.2} parent=0 // pred_check_branch
    %191 = sbr.rel (0) target = $region17
  $region16: #{multiscale_conv_block_forward.2} parent=0 // pred_region
    _
  $region17: #{multiscale_conv_block_forward.2} parent=0 // pred_fallthru
    _
  // Predicated region
  $region18: #{multiscale_conv_block_forward.2} parent=0 // pred_check
    _
  $region19: #{multiscale_conv_block_forward.2} parent=0 // pred_check_branch
    %193 = sbr.rel (0) target = $region21
  $region20: #{multiscale_conv_block_forward.2} parent=0 // pred_region
    _
  $region21: #{multiscale_conv_block_forward.2} parent=0 // pred_fallthru
    _
  // Predicated region
  $region22: #{multiscale_conv_block_forward.2} parent=0 // pred_check
    _
  $region23: #{multiscale_conv_block_forward.2} parent=0 // pred_check_branch
    %195 = sbr.rel (0) target = $region25
  $region24: #{multiscale_conv_block_forward.2} parent=0 // pred_region
    _
  $region25: #{multiscale_conv_block_forward.2} parent=0 // pred_fallthru
    _

// kernel: multiscale_conv_block_forward.3
$region0: #{multiscale_conv_block_forward.3}
  #allocation0 [shape = 'u32[]', space=smem, size = 0x4, offset = 0x4, fixed_abs, tag = 'smem constant byte address 0x4 - core index']
  #allocation1 [shape = 'u32[72,128]{1,0:T(1,128)}', space=vmem, size = 0x9000, scoped, tag = 'internal scratch']
  %s0 = inlined_call_operand.vmem [shape: f32[8,134], index: 0, kind: input, shape index: {}]
  %s1 = inlined_call_operand.vmem [shape: f32[8,28], index: 1, kind: input, shape index: {}]
  %s2 = inlined_call_operand.vmem [shape: f32[8,1], index: 2, kind: input, shape index: {}]
  %s3 = inlined_call_operand.vmem [shape: f32[8,1], index: 3, kind: input, shape index: {}]
  %s4 = inlined_call_operand.hbm [shape: f32[16,128], index: 4, kind: output, shape index: {}]
  %s5 = sld [smem:[#allocation0]]
  $region26: #{multiscale_conv_block_forward.3} parent=0
    _
  %s7 = ssub.s32 1, %s5
  %s8 = scalar_select 0, %s7, %s5
  $region1: #{multiscale_conv_block_forward.3} parent=0
    #allocation2 [shape = 'u8[8192]{0}', space=vmem, size = 0x2000, scoped, tag = 'output window, operand 0, single buffered']
    #allocation3 [shape = 's32[1]{0}', space=sflag, size = 0x4, scoped, tag = 'scoped memory for multiscale_conv_block_forward.3']
    %9 = vsyncpa [#allocation3], 0
    // Predicated region
    $region2: #{multiscale_conv_block_forward.3} parent=1 // pred_check
      _
    $region3: #{multiscale_conv_block_forward.3} parent=1 // pred_check_branch
      %11 = sbr.rel (0) target = $region5
    $region4: #{multiscale_conv_block_forward.3} parent=1 // pred_region
      _
    $region5: #{multiscale_conv_block_forward.3} parent=1 // pred_fallthru
      _
    // Predicated region
    $region6: #{multiscale_conv_block_forward.3} parent=1 // pred_check
      _
    $region7: #{multiscale_conv_block_forward.3} parent=1 // pred_check_branch
      %13 = sbr.rel (0) target = $region9
    $region8: #{multiscale_conv_block_forward.3} parent=1 // pred_region
      _
    $region9: #{multiscale_conv_block_forward.3} parent=1 // pred_fallthru
      _
    // Predicated region
    $region10: #{multiscale_conv_block_forward.3} parent=1 // pred_check
      _
    $region11: #{multiscale_conv_block_forward.3} parent=1 // pred_check_branch
      %15 = sbr.rel (0) target = $region13
    $region12: #{multiscale_conv_block_forward.3} parent=1 // pred_region
      _
    $region13: #{multiscale_conv_block_forward.3} parent=1 // pred_fallthru
      _
    // Predicated region
    $region14: #{multiscale_conv_block_forward.3} parent=1 // pred_check
      _
    $region15: #{multiscale_conv_block_forward.3} parent=1 // pred_check_branch
      %17 = sbr.rel (0) target = $region17
    $region16: #{multiscale_conv_block_forward.3} parent=1 // pred_region
      _
    $region17: #{multiscale_conv_block_forward.3} parent=1 // pred_fallthru
      _
    %v18 = vld [vmem:[%s1] sm:$0xff]
    %v19 = vld [vmem:[%s2] sm:$0xff]
    %21 = vset.pattern.permute.xlu0 0
    %22 = vperm.xlu0 %21, %v19
    %v23 = vpop.permute.xlu0 %22
    %v25 = vld [vmem:[%s3] sm:$0xff]
    %27 = vset.pattern.permute.xlu0 0
    %28 = vperm.xlu0 %27, %v25
    %v29 = vpop.permute.xlu0 %28
    %v31 = vld [vmem:[%s0] sm:$0xf]
    %v32 = vld [vmem:[%s0 + $0x8] sm:$0xf]
    %v35 = vrot.slane %v31, 4
    %v36 = vrot.slane %v32, 4
    %37 = vrot.lane.b32.xlu0 %v35, 127
    %v38 = vpop.permute.xlu0 %37
    %39 = vrot.lane.b32.xlu0 %v36, 127
    %v40 = vpop.permute.xlu0 %39
    %vm41 = vcmask 1039360
    %v42 = vsel %vm41, %v38, %v40
    %44 = vrot.lane.b32.xlu0 %v31, 126
    %v45 = vpop.permute.xlu0 %44
    %46 = vrot.lane.b32.xlu0 %v32, 126
    %v47 = vpop.permute.xlu0 %46
    %vm48 = vcmask 1031168
    %v49 = vsel %vm48, %v45, %v47
    %51 = vrot.lane.b32.xlu0 %v35, 125
    %v52 = vpop.permute.xlu0 %51
    %53 = vrot.lane.b32.xlu0 %v36, 125
    %v54 = vpop.permute.xlu0 %53
    %vm55 = vcmask 1022976
    %v56 = vsel %vm55, %v52, %v54
    %58 = vrot.lane.b32.xlu0 %v31, 124
    %v59 = vpop.permute.xlu0 %58
    %60 = vrot.lane.b32.xlu0 %v32, 124
    %v61 = vpop.permute.xlu0 %60
    %vm62 = vcmask 1014784
    %v63 = vsel %vm62, %v59, %v61
    %65 = vrot.lane.b32.xlu0 %v35, 123
    %v66 = vpop.permute.xlu0 %65
    %67 = vrot.lane.b32.xlu0 %v36, 123
    %v68 = vpop.permute.xlu0 %67
    %vm69 = vcmask 1006592
    %v70 = vsel %vm69, %v66, %v68
    %72 = vrot.lane.b32.xlu0 %v31, 122
    %v73 = vpop.permute.xlu0 %72
    %74 = vrot.lane.b32.xlu0 %v32, 122
    %v75 = vpop.permute.xlu0 %74
    %vm76 = vcmask 998400
    %v77 = vsel %vm76, %v73, %v75
    %vm78 = vcmask 1043456
    %v79 = vsel %vm78, %v31, %v42
    %v80 = vsel %vm78, %v49, %v56
    %v81 = vsel %vm78, %v63, %v70
    %vm82 = vcmask 228352
    %v84 = vsel %vm82, %v18, 0
    %v86 = vsel %vm78, %v77, 0
    %88 = vmatpush.msra.mxu0 0.0
    %89 = vmatpush.msra.mxu0 0.0
    %90 = vmatpush.msra.mxu0 0.0
    %91 = vmatpush.msra.mxu0 0.0
    %92 = vmatpush.msra.mxu0 0.0
    %93 = vmatpush.msra.mxu0 0.0
    %94 = vmatpush.msra.mxu0 0.0
    %95 = vmatpush.msra.mxu0 0.0
    %96 = vmatpush.msra.mxu0 0.0
    %97 = vmatpush.msra.mxu0 0.0
    %98 = vmatpush.msra.mxu0 0.0
    %99 = vmatpush.msra.mxu0 0.0
    %100 = vmatpush.msra.mxu0 %v86
    %101 = vmatpush.msra.mxu0 %v81
    %102 = vmatpush.msra.mxu0 %v80
    %103 = vmatpush.msra.mxu0 %v79
    %104 = vmatmul.f32.gmra.mxu0 %v84
    %v105 = vpop.f32.mrf.mxu0
    %v106 = vadd.f32 0.0, %v105
    %107 = vdwg.mxu0
    %v108 = vmul.f32 %v106, %v23
    %v109 = vadd.f32 %v108, %v29
    %v110 = vmax.f32 %v109, 0.0
    %111 = vst [vmem:[#allocation2] sm:$0xff] %v110
    %v112 = vld [vmem:[%s0] sm:$0xf0]
    %v113 = vld [vmem:[%s0 + $0x8] sm:$0xf0]
    %v115 = vrot.slane %v112, 4
    %118 = vrot.lane.b32.xlu0 %v112, 127
    %v119 = vpop.permute.xlu0 %118
    %120 = vrot.lane.b32.xlu0 %v113, 127
    %v121 = vpop.permute.xlu0 %120
    %v122 = vsel %vm41, %v119, %v121
    %v124 = vrot.slane %v113, 4
    %125 = vrot.lane.b32.xlu0 %v115, 126
    %v126 = vpop.permute.xlu0 %125
    %127 = vrot.lane.b32.xlu0 %v124, 126
    %v128 = vpop.permute.xlu0 %127
    %v129 = vsel %vm48, %v126, %v128
    %131 = vrot.lane.b32.xlu0 %v112, 125
    %v132 = vpop.permute.xlu0 %131
    %133 = vrot.lane.b32.xlu0 %v113, 125
    %v134 = vpop.permute.xlu0 %133
    %v135 = vsel %vm55, %v132, %v134
    %137 = vrot.lane.b32.xlu0 %v115, 124
    %v138 = vpop.permute.xlu0 %137
    %139 = vrot.lane.b32.xlu0 %v124, 124
    %v140 = vpop.permute.xlu0 %139
    %v141 = vsel %vm62, %v138, %v140
    %143 = vrot.lane.b32.xlu0 %v112, 123
    %v144 = vpop.permute.xlu0 %143
    %145 = vrot.lane.b32.xlu0 %v113, 123
    %v146 = vpop.permute.xlu0 %145
    %v147 = vsel %vm69, %v144, %v146
    %149 = vrot.lane.b32.xlu0 %v115, 122
    %v150 = vpop.permute.xlu0 %149
    %151 = vrot.lane.b32.xlu0 %v124, 122
    %v152 = vpop.permute.xlu0 %151
    %v153 = vsel %vm76, %v150, %v152
    %v154 = vsel %vm78, %v115, %v122
    %v155 = vsel %vm78, %v129, %v135
    %v156 = vsel %vm78, %v141, %v147
    %v157 = vsel %vm78, %v153, 0
    %159 = vmatpush.msra.mxu0 0.0
    %160 = vmatpush.msra.mxu0 0.0
    %161 = vmatpush.msra.mxu0 0.0
    %162 = vmatpush.msra.mxu0 0.0
    %163 = vmatpush.msra.mxu0 0.0
    %164 = vmatpush.msra.mxu0 0.0
    %165 = vmatpush.msra.mxu0 0.0
    %166 = vmatpush.msra.mxu0 0.0
    %167 = vmatpush.msra.mxu0 0.0
    %168 = vmatpush.msra.mxu0 0.0
    %169 = vmatpush.msra.mxu0 0.0
    %170 = vmatpush.msra.mxu0 0.0
    %171 = vmatpush.msra.mxu0 %v157
    %172 = vmatpush.msra.mxu0 %v156
    %173 = vmatpush.msra.mxu0 %v155
    %174 = vmatpush.msra.mxu0 %v154
    %175 = vmatmul.f32.gmra.mxu0 %v84
    %v176 = vpop.f32.mrf.mxu0
    %v177 = vadd.f32 0.0, %v176
    %178 = vdwg.mxu0
    %v179 = vmul.f32 %v177, %v23
    %v180 = vadd.f32 %v179, %v29
    %v181 = vmax.f32 %v180, 0.0
    %182 = vst [vmem:[#allocation2 + $0x8] sm:$0xff] %v181
    // Predicated region
    $region18: #{multiscale_conv_block_forward.3} parent=1 // pred_check
      _
    $region19: #{multiscale_conv_block_forward.3} parent=1 // pred_check_branch
      %184 = sbr.rel (0) target = $region21
    $region20: #{multiscale_conv_block_forward.3} parent=1 // pred_region
      %186 = vsyncadd [#allocation3], 0
      %s187 = sshll.u32 [#allocation2], 4
      %s188 = int_to_ptr.vmem [resolvable:$true] %s187
      %s189 = sshll.u32 %s4, 4
      %s190 = int_to_ptr.hbm [resolvable:$true] %s189
      %195 = dma.vmem_to_hbm [thread:$0]  %s188, 256, %s190, [#allocation3], 128, 128, 8
    $region21: #{multiscale_conv_block_forward.3} parent=1 // pred_fallthru
      _
    // Predicated region
    $region22: #{multiscale_conv_block_forward.3} parent=1 // pred_check
      _
    $region23: #{multiscale_conv_block_forward.3} parent=1 // pred_check_branch
      %197 = sbr.rel (0) target = $region25
    $region24: #{multiscale_conv_block_forward.3} parent=1 // pred_region
      %199 = dma.done [#allocation3], 256
    $region25: #{multiscale_conv_block_forward.3} parent=1 // pred_fallthru
      _
    %200 = vsyncpa [#allocation3], 1

</llo_original>
